<compile_context>
chip_gen: v5e
topology: v5e:2x2
jax: 0.10.0
libtpu: 0.0.40
codegen_flags: <defaults>
</compile_context>

<pallas_src>
import math
from functools import partial

import jax
import jax.numpy as jnp
from jax import lax
from jax.experimental import pallas as pl
from jax.experimental.pallas import tpu as pltpu

INPUT_DIM = 10
H1, H2 = 64, 32
BN_EPS = 1e-5
L2_LAMBDA = 0.01

TILE_B = 4096          # batch-tile (lanes) for the phase-gridded large-batch path
_VEC_COLS = 8          # packed per-feature column vectors


# ---------------------------------------------------------------------------
# generation-dependent VMEM budget & fused-path batch cap
# ---------------------------------------------------------------------------
def _physical_vmem_bytes():
    try:
        info = pltpu.get_tpu_info()
        for attr in ("vmem_capacity_bytes", "vmem_size_bytes", "vmem_bytes"):
            v = getattr(info, attr, None)
            if v:
                return int(v)
    except Exception:
        pass
    return 64 * 1024 * 1024        # conservative default (v7x-sized)


def _derive_budgets():
    phys = _physical_vmem_bytes()
    budget = min(phys // 2, 64 * 1024 * 1024)     # 32 MiB on v7x, 64 MiB on v5e/v6e
    # fused single-tile kernel costs ~2 KiB of VMEM per batch row (lane-dense layout,
    # conservative incl. intermediates), so:
    cap = max(TILE_B, (budget // 2048 // 1024) * 1024)
    return budget, cap


_VMEM_LIMIT, FUSED_MAX_B = _derive_budgets()


# ---------------------------------------------------------------------------
# helpers
# ---------------------------------------------------------------------------
def _full_spec(shape):
    return pl.BlockSpec(shape, lambda: (0,) * len(shape))


def _pack_cols(vectors):
    """Pack small per-feature vectors as columns of one (H1, 8) f32 array."""
    packed = jnp.zeros((H1, _VEC_COLS), jnp.float32)
    for c, v in enumerate(vectors):
        v = jnp.ravel(v).astype(jnp.float32)
        packed = packed.at[: v.shape[0], c].set(v)
    return packed


def _unpack_cols(vec):
    b1, g1, be1 = vec[:, 0:1], vec[:, 1:2], vec[:, 2:3]                 # [H1,1]
    b2, g2, be2 = vec[:H2, 3:4], vec[:H2, 4:5], vec[:H2, 5:6]           # [H2,1]
    b3 = vec[:INPUT_DIM, 6:7]                                           # [10,1]
    return b1, g1, be1, b2, g2, be2, b3


# ---------------------------------------------------------------------------
# fused single-call kernel (covers B <= FUSED_MAX_B)
# ---------------------------------------------------------------------------
def _fused_kernel(xT_ref, w1t_ref, w2t_ref, w3t_ref, vec_ref, o_ref, *, inv_b):
    x = xT_ref[...]                                                     # [10, B]
    b1, g1, be1, b2, g2, be2, b3 = _unpack_cols(vec_ref[...])

    # layer 1 (input scale folded into w1t/b1) + BatchNorm(train) + ReLU
    # single-pass variance (E[z^2]-mu^2, clamped >= 0) is adequate here: activations
    # are O(1) so the cancellation error stays well under the 1e-4 tolerance.
    z = jnp.dot(w1t_ref[...], x, preferred_element_type=jnp.float32) + b1   # [64, B]
    mu = jnp.sum(z, axis=1, keepdims=True) * inv_b
    var = jnp.maximum(jnp.sum(z * z, axis=1, keepdims=True) * inv_b - mu * mu, 0.0)
    sc = g1 * lax.rsqrt(var + BN_EPS)
    a = jnp.maximum(z * sc + (be1 - mu * sc), 0.0)

    # layer 2 + BatchNorm(train) + ReLU
    z = jnp.dot(w2t_ref[...], a, preferred_element_type=jnp.float32) + b2   # [32, B]
    mu = jnp.sum(z, axis=1, keepdims=True) * inv_b
    var = jnp.maximum(jnp.sum(z * z, axis=1, keepdims=True) * inv_b - mu * mu, 0.0)
    sc = g2 * lax.rsqrt(var + BN_EPS)
    a = jnp.maximum(z * sc + (be2 - mu * sc), 0.0)

    # layer 3 + exact sigmoid
    z = jnp.dot(w3t_ref[...], a, preferred_element_type=jnp.float32) + b3   # [10, B]
    o_ref[...] = (1.0 / (1.0 + jnp.exp(-z))).astype(o_ref.dtype)


def _forward_fused(xT, w1t, w2t, w3t, vec):
    B = xT.shape[1]
    return pl.pallas_call(
        partial(_fused_kernel, inv_b=1.0 / B),
        out_shape=jax.ShapeDtypeStruct((INPUT_DIM, B), jnp.float32),
        in_specs=[_full_spec((INPUT_DIM, B)),
                  _full_spec((H1, INPUT_DIM)),
                  _full_spec((H2, H1)),
                  _full_spec((INPUT_DIM, H2)),
                  _full_spec((H1, _VEC_COLS))],
        out_specs=_full_spec((INPUT_DIM, B)),
        compiler_params=pltpu.CompilerParams(vmem_limit_bytes=_VMEM_LIMIT),
    )(xT, w1t, w2t, w3t, vec)


# ---------------------------------------------------------------------------
# phase-gridded large-batch kernel: grid = (3 phases, nb batch-tiles), one call.
#   phase 0: accumulate full-batch stats of z1
#   phase 1: fold BN1 (at i==0), accumulate full-batch stats of z2
#   phase 2: fold BN2 (at i==0), run full network, write output tiles
# ---------------------------------------------------------------------------
def _phased_kernel(xT_ref, w1t_ref, w2t_ref, w3t_ref, vec_ref, o_ref,
                   sum1, sq1, sum2, sq2, sc1, sh1, sc2, sh2,
                   *, batch, tile_b, inv_b):
    p = pl.program_id(0)      # phase
    i = pl.program_id(1)      # batch tile

    b1, g1, be1, b2, g2, be2, b3 = _unpack_cols(vec_ref[...])

    x = xT_ref[...]                                                     # [10, tile_b]
    z1 = jnp.dot(w1t_ref[...], x, preferred_element_type=jnp.float32) + b1  # [64, tile]

    ragged = (batch % tile_b) != 0            # static
    if ragged:
        col = lax.broadcasted_iota(jnp.int32, (1, tile_b), 1) + i * tile_b
        valid = col < batch                   # [1, tile_b], masks tail lanes

    # ---- phase 0: layer-1 statistics ------------------------------------------
    @pl.when(p == 0)
    def _stats1():
        @pl.when(i == 0)
        def _init():
            sum1[...] = jnp.zeros_like(sum1)
            sq1[...] = jnp.zeros_like(sq1)
            sum2[...] = jnp.zeros_like(sum2)
            sq2[...] = jnp.zeros_like(sq2)

        zm = jnp.where(valid, z1, 0.0) if ragged else z1
        sum1[...] += jnp.sum(zm, axis=1, keepdims=True)
        sq1[...] += jnp.sum(zm * zm, axis=1, keepdims=True)

    # ---- phase 1: fold BN1, layer-2 statistics ---------------------------------
    @pl.when(p == 1)
    def _stats2():
        @pl.when(i == 0)
        def _fold1():
            mu = sum1[...] * inv_b
            var = jnp.maximum(sq1[...] * inv_b - mu * mu, 0.0)
            s = g1 * lax.rsqrt(var + BN_EPS)
            sc1[...] = s
            sh1[...] = be1 - mu * s

        a1 = jnp.maximum(z1 * sc1[...] + sh1[...], 0.0)
        z2 = jnp.dot(w2t_ref[...], a1, preferred_element_type=jnp.float32) + b2
        zm = jnp.where(valid, z2, 0.0) if ragged else z2
        sum2[...] += jnp.sum(zm, axis=1, keepdims=True)
        sq2[...] += jnp.sum(zm * zm, axis=1, keepdims=True)

    # ---- phase 2: fold BN2, apply full network, write output -------------------
    @pl.when(p == 2)
    def _apply():
        @pl.when(i == 0)
        def _fold2():
            mu = sum2[...] * inv_b
            var = jnp.maximum(sq2[...] * inv_b - mu * mu, 0.0)
            s = g2 * lax.rsqrt(var + BN_EPS)
            sc2[...] = s
            sh2[...] = be2 - mu * s

        a1 = jnp.maximum(z1 * sc1[...] + sh1[...], 0.0)
        z2 = jnp.dot(w2t_ref[...], a1, preferred_element_type=jnp.float32) + b2
        a2 = jnp.maximum(z2 * sc2[...] + sh2[...], 0.0)
        z3 = jnp.dot(w3t_ref[...], a2, preferred_element_type=jnp.float32) + b3
        # ragged last tile: Pallas drops out-of-bounds lanes of the partial out block.
        o_ref[...] = (1.0 / (1.0 + jnp.exp(-z3))).astype(o_ref.dtype)


def _forward_tiled(xT, w1t, w2t, w3t, vec, *, tile_b):
    B = xT.shape[1]
    nb = pl.cdiv(B, tile_b)
    x_spec = pl.BlockSpec((INPUT_DIM, tile_b), lambda p, i: (0, i))
    return pl.pallas_call(
        partial(_phased_kernel, batch=B, tile_b=tile_b, inv_b=1.0 / B),
        out_shape=jax.ShapeDtypeStruct((INPUT_DIM, B), jnp.float32),
        grid=(3, nb),
        in_specs=[x_spec,
                  pl.BlockSpec((H1, INPUT_DIM), lambda p, i: (0, 0)),
                  pl.BlockSpec((H2, H1), lambda p, i: (0, 0)),
                  pl.BlockSpec((INPUT_DIM, H2), lambda p, i: (0, 0)),
                  pl.BlockSpec((H1, _VEC_COLS), lambda p, i: (0, 0))],
        out_specs=pl.BlockSpec((INPUT_DIM, tile_b), lambda p, i: (0, i)),
        scratch_shapes=[pltpu.VMEM((H1, 1), jnp.float32),   # sum1
                        pltpu.VMEM((H1, 1), jnp.float32),   # sq1
                        pltpu.VMEM((H2, 1), jnp.float32),   # sum2
                        pltpu.VMEM((H2, 1), jnp.float32),   # sq2
                        pltpu.VMEM((H1, 1), jnp.float32),   # sc1
                        pltpu.VMEM((H1, 1), jnp.float32),   # sh1
                        pltpu.VMEM((H2, 1), jnp.float32),   # sc2
                        pltpu.VMEM((H2, 1), jnp.float32)],  # sh2
        compiler_params=pltpu.CompilerParams(
            dimension_semantics=("arbitrary", "arbitrary"),
            vmem_limit_bytes=_VMEM_LIMIT),
    )(xT, w1t, w2t, w3t, vec)


# ---------------------------------------------------------------------------
# public forward
# ---------------------------------------------------------------------------
@partial(jax.jit, static_argnames=("compute_l2", "force_tiled", "tile_b"))
def scoring_forward(x, params, *, compute_l2=True, force_tiled=False, tile_b=TILE_B):
    """Pallas-backed forward. x: [B, INPUT_DIM] softmax probabilities (float32)."""
    if x.ndim == 1:
        # NOTE: training-mode BatchNorm with batch size 1 is ill-defined (PyTorch
        # raises); we follow the module's unsqueeze and don't special-case it.
        x = x[None, :]
    if x.ndim != 2:
        raise ValueError(f"Expected 2D input tensor, got shape {x.shape}")
    x = x.astype(jnp.float32)

    (w1, b1, g1, be1, w2, b2, g2, be2, w3, b3) = params

    # Fold the input scaling (2x - 1) into layer 1 and transpose weights for the
    # lane-dense (batch-on-lanes) layout:
    #   (2x - 1) @ W1 + b1 == x @ (2 W1) + (b1 - sum_k W1[k, :])
    w1t = (2.0 * w1).T.astype(jnp.float32)            # [H1, 10]
    b1f = b1 - jnp.sum(w1, axis=0)
    w2t = w2.T.astype(jnp.float32)                    # [H2, H1]
    w3t = w3.T.astype(jnp.float32)                    # [10, H2]
    vec = _pack_cols([b1f, g1, be1, b2, g2, be2, b3])

    xT = x.T                                          # [10, B] — batch on lanes

    B = x.shape[0]
    if force_tiled or B > FUSED_MAX_B:
        outT = _forward_tiled(xT, w1t, w2t, w3t, vec, tile_b=tile_b)
    else:
        outT = _forward_fused(xT, w1t, w2t, w3t, vec)
    out = outT.T                                      # back to [B, 10]

    if compute_l2:
        # single concatenated reduction over all parameters (module stores this on
        # self.l2_reg rather than returning it)
        flat = jnp.concatenate([jnp.ravel(p).astype(jnp.float32) for p in params])
        l2_reg = L2_LAMBDA * jnp.sum(flat * flat)
    else:
        l2_reg = jnp.float32(0.0)
    return out, l2_reg


# ---------------------------------------------------------------------------
# init + pure-JAX reference
# ---------------------------------------------------------------------------
def init_params(key):
    """kaiming_normal_ weights (fan_in, gain sqrt(2)), zero biases; BN gamma=1, beta=0."""
    dims = (INPUT_DIM, H1, H2, INPUT_DIM)
    keys = jax.random.split(key, 3)
    ws, bs = [], []
    for i in range(3):
        fan_in, fan_out = dims[i], dims[i + 1]
        std = math.sqrt(2.0 / fan_in)
        ws.append(std * jax.random.normal(keys[i], (fan_in, fan_out), jnp.float32))
        bs.append(jnp.zeros((fan_out,), jnp.float32))
    g1, be1 = jnp.ones((H1,), jnp.float32), jnp.zeros((H1,), jnp.float32)
    g2, be2 = jnp.ones((H2,), jnp.float32), jnp.zeros((H2,), jnp.float32)
    return (ws[0], bs[0], g1, be1, ws[1], bs[1], g2, be2, ws[2], bs[2])


def _reference(x, params):
    (w1, b1, g1, be1, w2, b2, g2, be2, w3, b3) = params
    h = 2.0 * x - 1.0
    h = h @ w1 + b1
    mu, var = jnp.mean(h, 0), jnp.var(h, 0)
    h = jnp.maximum(g1 * (h - mu) / jnp.sqrt(var + BN_EPS) + be1, 0.0)
    h = h @ w2 + b2
    mu, var = jnp.mean(h, 0), jnp.var(h, 0)
    h = jnp.maximum(g2 * (h - mu) / jnp.sqrt(var + BN_EPS) + be2, 0.0)
    h = h @ w3 + b3
    return jax.nn.sigmoid(h)


# ---------------------------------------------------------------------------
if __name__ == "__main__":
    key = jax.random.PRNGKey(0)
    k_param, k_small, k_med = jax.random.split(key, 3)
    params = init_params(k_param)

    # small batch -> fused single-call path
    b_small = 8
    x_small = jax.nn.softmax(
        jax.random.normal(k_small, (b_small, INPUT_DIM), jnp.float32), axis=-1)
    out_small, l2 = scoring_forward(x_small, params)
    out_small, l2 = jax.block_until_ready((out_small, l2))
    ref_small = _reference(x_small, params)
    assert out_small.shape == (b_small, INPUT_DIM)
    err = float(jnp.max(jnp.abs(out_small - ref_small)))
    assert err < 1e-4, f"fused path mismatch: {err}"

    # exercise the phase-gridded tiled path (forced, small tiles, ragged last tile)
    b_med = 600
    x_med = jax.nn.softmax(
        jax.random.normal(k_med, (b_med, INPUT_DIM), jnp.float32), axis=-1)
    out_med, _ = scoring_forward(x_med, params, force_tiled=True, tile_b=256)
    out_med = jax.block_until_ready(out_med)
    ref_med = _reference(x_med, params)
    assert out_med.shape == (b_med, INPUT_DIM)
    err = float(jnp.max(jnp.abs(out_med - ref_med)))
    assert err < 1e-4, f"tiled path mismatch: {err}"

    print("KERNEL_OK")
</pallas_src>

<mosaic_0001>
module attributes {stable_mosaic.version = 11 : i64} {
  func.func @_fused_kernel(%arg0: memref<10x8xf32, #tpu.memory_space<vmem>>, %arg1: memref<64x10xf32, #tpu.memory_space<vmem>>, %arg2: memref<32x64xf32, #tpu.memory_space<vmem>>, %arg3: memref<10x32xf32, #tpu.memory_space<vmem>>, %arg4: memref<64x8xf32, #tpu.memory_space<vmem>>, %arg5: memref<10x8xf32, #tpu.memory_space<vmem>>) attributes {dimension_semantics = [], scalar_prefetch = 0 : i64, scratch_operands = 0 : i64, tpu.core_type = #tpu.core_type<tc>} {
    %c0 = arith.constant 0 : index
    %c0_0 = arith.constant 0 : index
    %0 = vector.load %arg0[%c0, %c0_0] : memref<10x8xf32, #tpu.memory_space<vmem>>, vector<10x8xf32>
    %c0_1 = arith.constant 0 : index
    %c0_2 = arith.constant 0 : index
    %1 = vector.load %arg4[%c0_1, %c0_2] : memref<64x8xf32, #tpu.memory_space<vmem>>, vector<64x8xf32>
    %2 = vector.extract_strided_slice %1 {offsets = [0, 0], sizes = [64, 1], strides = [1, 1]} : vector<64x8xf32> to vector<64x1xf32>
    %3 = vector.extract_strided_slice %1 {offsets = [0, 1], sizes = [64, 1], strides = [1, 1]} : vector<64x8xf32> to vector<64x1xf32>
    %4 = vector.extract_strided_slice %1 {offsets = [0, 2], sizes = [64, 1], strides = [1, 1]} : vector<64x8xf32> to vector<64x1xf32>
    %5 = vector.extract_strided_slice %1 {offsets = [0, 3], sizes = [32, 1], strides = [1, 1]} : vector<64x8xf32> to vector<32x1xf32>
    %6 = vector.extract_strided_slice %1 {offsets = [0, 4], sizes = [32, 1], strides = [1, 1]} : vector<64x8xf32> to vector<32x1xf32>
    %7 = vector.extract_strided_slice %1 {offsets = [0, 5], sizes = [32, 1], strides = [1, 1]} : vector<64x8xf32> to vector<32x1xf32>
    %8 = vector.extract_strided_slice %1 {offsets = [0, 6], sizes = [10, 1], strides = [1, 1]} : vector<64x8xf32> to vector<10x1xf32>
    %c0_3 = arith.constant 0 : index
    %c0_4 = arith.constant 0 : index
    %9 = vector.load %arg1[%c0_3, %c0_4] : memref<64x10xf32, #tpu.memory_space<vmem>>, vector<64x10xf32>
    %cst = arith.constant dense<0.000000e+00> : vector<64x8xf32>
    %10 = tpu.matmul %9, %0, %cst {dimension_numbers = #tpu.dot_dimension_numbers<[1], [0], [0], [1], [0, 0, 1, 1], [], []>} : vector<64x10xf32>, vector<10x8xf32>, vector<64x8xf32> -> vector<64x8xf32>
    %11 = vector.broadcast %2 : vector<64x1xf32> to vector<64x8xf32>
    %12 = arith.addf %10, %11 : vector<64x8xf32>
    %cst_5 = arith.constant dense<0.000000e+00> : vector<64xf32>
    %13 = vector.multi_reduction <add>, %12, %cst_5 [1] : vector<64x8xf32> to vector<64xf32>
    %14 = vector.shape_cast %13 : vector<64xf32> to vector<64x1xf32>
    %cst_6 = arith.constant 1.250000e-01 : f32
    %15 = vector.broadcast %cst_6 : f32 to vector<64x1xf32>
    %16 = arith.mulf %14, %15 : vector<64x1xf32>
    %17 = arith.mulf %12, %12 : vector<64x8xf32>
    %cst_7 = arith.constant dense<0.000000e+00> : vector<64xf32>
    %18 = vector.multi_reduction <add>, %17, %cst_7 [1] : vector<64x8xf32> to vector<64xf32>
    %19 = vector.shape_cast %18 : vector<64xf32> to vector<64x1xf32>
    %cst_8 = arith.constant 1.250000e-01 : f32
    %20 = vector.broadcast %cst_8 : f32 to vector<64x1xf32>
    %21 = arith.mulf %19, %20 : vector<64x1xf32>
    %22 = arith.mulf %16, %16 : vector<64x1xf32>
    %23 = arith.subf %21, %22 : vector<64x1xf32>
    %cst_9 = arith.constant 0.000000e+00 : f32
    %24 = vector.broadcast %cst_9 : f32 to vector<64x1xf32>
    %25 = arith.maximumf %23, %24 : vector<64x1xf32>
    %cst_10 = arith.constant 9.99999974E-6 : f32
    %26 = vector.broadcast %cst_10 : f32 to vector<64x1xf32>
    %27 = arith.addf %25, %26 : vector<64x1xf32>
    %28 = math.rsqrt %27 : vector<64x1xf32>
    %29 = arith.mulf %3, %28 : vector<64x1xf32>
    %30 = vector.broadcast %29 : vector<64x1xf32> to vector<64x8xf32>
    %31 = arith.mulf %12, %30 : vector<64x8xf32>
    %32 = arith.mulf %16, %29 : vector<64x1xf32>
    %33 = arith.subf %4, %32 : vector<64x1xf32>
    %34 = vector.broadcast %33 : vector<64x1xf32> to vector<64x8xf32>
    %35 = arith.addf %31, %34 : vector<64x8xf32>
    %cst_11 = arith.constant 0.000000e+00 : f32
    %36 = vector.broadcast %cst_11 : f32 to vector<64x8xf32>
    %37 = arith.maximumf %35, %36 : vector<64x8xf32>
    %c0_12 = arith.constant 0 : index
    %c0_13 = arith.constant 0 : index
    %38 = vector.load %arg2[%c0_12, %c0_13] : memref<32x64xf32, #tpu.memory_space<vmem>>, vector<32x64xf32>
    %cst_14 = arith.constant dense<0.000000e+00> : vector<32x8xf32>
    %39 = tpu.matmul %38, %37, %cst_14 {dimension_numbers = #tpu.dot_dimension_numbers<[1], [0], [0], [1], [0, 0, 1, 1], [], []>} : vector<32x64xf32>, vector<64x8xf32>, vector<32x8xf32> -> vector<32x8xf32>
    %40 = vector.broadcast %5 : vector<32x1xf32> to vector<32x8xf32>
    %41 = arith.addf %39, %40 : vector<32x8xf32>
    %cst_15 = arith.constant dense<0.000000e+00> : vector<32xf32>
    %42 = vector.multi_reduction <add>, %41, %cst_15 [1] : vector<32x8xf32> to vector<32xf32>
    %43 = vector.shape_cast %42 : vector<32xf32> to vector<32x1xf32>
    %cst_16 = arith.constant 1.250000e-01 : f32
    %44 = vector.broadcast %cst_16 : f32 to vector<32x1xf32>
    %45 = arith.mulf %43, %44 : vector<32x1xf32>
    %46 = arith.mulf %41, %41 : vector<32x8xf32>
    %cst_17 = arith.constant dense<0.000000e+00> : vector<32xf32>
    %47 = vector.multi_reduction <add>, %46, %cst_17 [1] : vector<32x8xf32> to vector<32xf32>
    %48 = vector.shape_cast %47 : vector<32xf32> to vector<32x1xf32>
    %cst_18 = arith.constant 1.250000e-01 : f32
    %49 = vector.broadcast %cst_18 : f32 to vector<32x1xf32>
    %50 = arith.mulf %48, %49 : vector<32x1xf32>
    %51 = arith.mulf %45, %45 : vector<32x1xf32>
    %52 = arith.subf %50, %51 : vector<32x1xf32>
    %cst_19 = arith.constant 0.000000e+00 : f32
    %53 = vector.broadcast %cst_19 : f32 to vector<32x1xf32>
    %54 = arith.maximumf %52, %53 : vector<32x1xf32>
    %cst_20 = arith.constant 9.99999974E-6 : f32
    %55 = vector.broadcast %cst_20 : f32 to vector<32x1xf32>
    %56 = arith.addf %54, %55 : vector<32x1xf32>
    %57 = math.rsqrt %56 : vector<32x1xf32>
    %58 = arith.mulf %6, %57 : vector<32x1xf32>
    %59 = vector.broadcast %58 : vector<32x1xf32> to vector<32x8xf32>
    %60 = arith.mulf %41, %59 : vector<32x8xf32>
    %61 = arith.mulf %45, %58 : vector<32x1xf32>
    %62 = arith.subf %7, %61 : vector<32x1xf32>
    %63 = vector.broadcast %62 : vector<32x1xf32> to vector<32x8xf32>
    %64 = arith.addf %60, %63 : vector<32x8xf32>
    %cst_21 = arith.constant 0.000000e+00 : f32
    %65 = vector.broadcast %cst_21 : f32 to vector<32x8xf32>
    %66 = arith.maximumf %64, %65 : vector<32x8xf32>
    %c0_22 = arith.constant 0 : index
    %c0_23 = arith.constant 0 : index
    %67 = vector.load %arg3[%c0_22, %c0_23] : memref<10x32xf32, #tpu.memory_space<vmem>>, vector<10x32xf32>
    %cst_24 = arith.constant dense<0.000000e+00> : vector<10x8xf32>
    %68 = tpu.matmul %67, %66, %cst_24 {dimension_numbers = #tpu.dot_dimension_numbers<[1], [0], [0], [1], [0, 0, 1, 1], [], []>} : vector<10x32xf32>, vector<32x8xf32>, vector<10x8xf32> -> vector<10x8xf32>
    %69 = vector.broadcast %8 : vector<10x1xf32> to vector<10x8xf32>
    %70 = arith.addf %68, %69 : vector<10x8xf32>
    %cst_25 = arith.constant 0.000000e+00 : f32
    %71 = vector.broadcast %cst_25 : f32 to vector<10x8xf32>
    %72 = arith.subf %71, %70 : vector<10x8xf32>
    %73 = math.exp %72 : vector<10x8xf32>
    %cst_26 = arith.constant 1.000000e+00 : f32
    %74 = vector.broadcast %cst_26 : f32 to vector<10x8xf32>
    %75 = arith.addf %74, %73 : vector<10x8xf32>
    %cst_27 = arith.constant 1.000000e+00 : f32
    %76 = vector.broadcast %cst_27 : f32 to vector<10x8xf32>
    %77 = arith.divf %76, %75 : vector<10x8xf32>
    %c0_28 = arith.constant 0 : index
    %c0_29 = arith.constant 0 : index
    %78 = vector.load %arg5[%c0_28, %c0_29] : memref<10x8xf32, #tpu.memory_space<vmem>>, vector<10x8xf32>
    tpu.vector_store %arg5[%c0_28, %c0_29], %77 {strides = array<i32>} : memref<10x8xf32, #tpu.memory_space<vmem>>, vector<10x8xf32>,
    return
  }
}

</mosaic_0001>

<llo_original>
// kernel: scoring_forward.1
$region0: #{scoring_forward.1}
  #allocation0 [shape = 'u32[]', space=smem, size = 0x4, offset = 0x4, fixed_abs, tag = 'smem constant byte address 0x4 - core index']
  #allocation1 [shape = 'u32[72,128]{1,0:T(1,128)}', space=vmem, size = 0x9000, scoped, tag = 'internal scratch']
  %s0 = inlined_call_operand.vmem [shape: f32[10,8], index: 0, kind: input, shape index: {}]
  %s1 = inlined_call_operand.vmem [shape: f32[64,10], index: 1, kind: input, shape index: {}]
  %s2 = inlined_call_operand.vmem [shape: f32[32,64], index: 2, kind: input, shape index: {}]
  %s3 = inlined_call_operand.vmem [shape: f32[10,32], index: 3, kind: input, shape index: {}]
  %s4 = inlined_call_operand.vmem [shape: f32[64,8], index: 4, kind: input, shape index: {}]
  %s5 = inlined_call_operand.vmem [shape: f32[10,8], index: 5, kind: output, shape index: {}]
  %s6 = sld [smem:[#allocation0]]
  $region30: #{scoring_forward.1} parent=0
    _
  %s8 = ssub.s32 1, %s6
  %s9 = scalar_select 0, %s8, %s6
  // Predicated region
  $region2: #{scoring_forward.1} parent=0 // pred_check
    _
  $region3: #{scoring_forward.1} parent=0 // pred_check_branch
    %11 = sbr.rel (0) target = $region5
  $region4: #{scoring_forward.1} parent=0 // pred_region
    _
  $region5: #{scoring_forward.1} parent=0 // pred_fallthru
    _
  // Predicated region
  $region6: #{scoring_forward.1} parent=0 // pred_check
    _
  $region7: #{scoring_forward.1} parent=0 // pred_check_branch
    %13 = sbr.rel (0) target = $region9
  $region8: #{scoring_forward.1} parent=0 // pred_region
    _
  $region9: #{scoring_forward.1} parent=0 // pred_fallthru
    _
  // Predicated region
  $region10: #{scoring_forward.1} parent=0 // pred_check
    _
  $region11: #{scoring_forward.1} parent=0 // pred_check_branch
    %15 = sbr.rel (0) target = $region13
  $region12: #{scoring_forward.1} parent=0 // pred_region
    _
  $region13: #{scoring_forward.1} parent=0 // pred_fallthru
    _
  // Predicated region
  $region14: #{scoring_forward.1} parent=0 // pred_check
    _
  $region15: #{scoring_forward.1} parent=0 // pred_check_branch
    %17 = sbr.rel (0) target = $region17
  $region16: #{scoring_forward.1} parent=0 // pred_region
    _
  $region17: #{scoring_forward.1} parent=0 // pred_fallthru
    _
  // Predicated region
  $region18: #{scoring_forward.1} parent=0 // pred_check
    _
  $region19: #{scoring_forward.1} parent=0 // pred_check_branch
    %19 = sbr.rel (0) target = $region21
  $region20: #{scoring_forward.1} parent=0 // pred_region
    _
  $region21: #{scoring_forward.1} parent=0 // pred_fallthru
    _
  %v20 = vld [vmem:[%s0] sm:$0xff]
  %v21 = vld [vmem:[%s0 + $0x8] sm:$0x3]
  %v22 = vld [vmem:[%s4] sm:$0xff]
  %v23 = vld [vmem:[%s4 + $0x8] sm:$0xff]
  %v24 = vld [vmem:[%s4 + $0x10] sm:$0xff]
  %v25 = vld [vmem:[%s4 + $0x18] sm:$0xff]
  %v26 = vld [vmem:[%s4 + $0x20] sm:$0xff]
  %v27 = vld [vmem:[%s4 + $0x28] sm:$0xff]
  %v28 = vld [vmem:[%s4 + $0x30] sm:$0xff]
  %v29 = vld [vmem:[%s4 + $0x38] sm:$0xff]
  %v30 = vld [vmem:[%s1] sm:$0xff]
  %v31 = vld [vmem:[%s1 + $0x8] sm:$0xff]
  %v32 = vld [vmem:[%s1 + $0x10] sm:$0xff]
  %v33 = vld [vmem:[%s1 + $0x18] sm:$0xff]
  %v34 = vld [vmem:[%s1 + $0x20] sm:$0xff]
  %v35 = vld [vmem:[%s1 + $0x28] sm:$0xff]
  %v36 = vld [vmem:[%s1 + $0x30] sm:$0xff]
  %v37 = vld [vmem:[%s1 + $0x38] sm:$0xff]
  %39 = vset.pattern.permute.xlu0 0
  %40 = vperm.xlu0 %39, %v22
  %v41 = vpop.permute.xlu0 %40
  %44 = vset.pattern.permute.xlu0 0
  %45 = vperm.xlu0 %44, %v23
  %v46 = vpop.permute.xlu0 %45
  %49 = vset.pattern.permute.xlu0 0
  %50 = vperm.xlu0 %49, %v24
  %v51 = vpop.permute.xlu0 %50
  %54 = vset.pattern.permute.xlu0 0
  %55 = vperm.xlu0 %54, %v25
  %v56 = vpop.permute.xlu0 %55
  %59 = vset.pattern.permute.xlu0 0
  %60 = vperm.xlu0 %59, %v26
  %v61 = vpop.permute.xlu0 %60
  %64 = vset.pattern.permute.xlu0 0
  %65 = vperm.xlu0 %64, %v27
  %v66 = vpop.permute.xlu0 %65
  %69 = vset.pattern.permute.xlu0 0
  %70 = vperm.xlu0 %69, %v28
  %v71 = vpop.permute.xlu0 %70
  %74 = vset.pattern.permute.xlu0 0
  %75 = vperm.xlu0 %74, %v29
  %v76 = vpop.permute.xlu0 %75
  %vm78 = vcmask 80896
  %v80 = vsel %vm78, %v30, 0
  %v83 = vsel %vm78, %v31, 0
  %v86 = vsel %vm78, %v32, 0
  %v89 = vsel %vm78, %v33, 0
  %v92 = vsel %vm78, %v34, 0
  %v95 = vsel %vm78, %v35, 0
  %v98 = vsel %vm78, %v36, 0
  %v101 = vsel %vm78, %v37, 0
  %vm103 = vcmask 1041408
  %v105 = vsel %vm103, %v21, 0
  %107 = vmatpush.msra.mxu0 0.0
  %108 = vmatpush.msra.mxu0 0.0
  %109 = vmatpush.msra.mxu0 0.0
  %110 = vmatpush.msra.mxu0 0.0
  %111 = vmatpush.msra.mxu0 0.0
  %112 = vmatpush.msra.mxu0 0.0
  %113 = vmatpush.msra.mxu0 0.0
  %114 = vmatpush.msra.mxu0 0.0
  %115 = vmatpush.msra.mxu0 0.0
  %116 = vmatpush.msra.mxu0 0.0
  %117 = vmatpush.msra.mxu0 0.0
  %118 = vmatpush.msra.mxu0 0.0
  %119 = vmatpush.msra.mxu0 0.0
  %120 = vmatpush.msra.mxu0 0.0
  %121 = vmatpush.msra.mxu0 %v105
  %122 = vmatpush.msra.mxu0 %v20
  %123 = vmatmul.f32.gmra.mxu0 %v80
  %v124 = vpop.f32.mrf.mxu0
  %v125 = vadd.f32 %v41, %v124
  %126 = vmatmul.f32.gmra.mxu0 %v83
  %v127 = vpop.f32.mrf.mxu0
  %v128 = vadd.f32 %v46, %v127
  %129 = vmatmul.f32.gmra.mxu0 %v86
  %v130 = vpop.f32.mrf.mxu0
  %v131 = vadd.f32 %v51, %v130
  %132 = vmatmul.f32.gmra.mxu0 %v89
  %v133 = vpop.f32.mrf.mxu0
  %v134 = vadd.f32 %v56, %v133
  %135 = vmatmul.f32.gmra.mxu0 %v92
  %v136 = vpop.f32.mrf.mxu0
  %v137 = vadd.f32 %v61, %v136
  %138 = vmatmul.f32.gmra.mxu0 %v95
  %v139 = vpop.f32.mrf.mxu0
  %v140 = vadd.f32 %v66, %v139
  %141 = vmatmul.f32.gmra.mxu0 %v98
  %v142 = vpop.f32.mrf.mxu0
  %v143 = vadd.f32 %v71, %v142
  %144 = vmatmul.f32.gmra.mxu0 %v101
  %v145 = vpop.f32.mrf.mxu0
  %v146 = vadd.f32 %v76, %v145
  %147 = vdwg.mxu0
  %vm148 = vcmask 64512
  %v149 = vsel %vm148, %v125, 0.0
  %150 = vadd.xlane.f32.xlu0 %v149
  %v151 = vpop.xlane.xlu0 %150
  %v152 = vsel %vm148, %v128, 0.0
  %153 = vadd.xlane.f32.xlu0 %v152
  %v154 = vpop.xlane.xlu0 %153
  %v155 = vsel %vm148, %v131, 0.0
  %156 = vadd.xlane.f32.xlu0 %v155
  %v157 = vpop.xlane.xlu0 %156
  %v158 = vsel %vm148, %v134, 0.0
  %159 = vadd.xlane.f32.xlu0 %v158
  %v160 = vpop.xlane.xlu0 %159
  %v161 = vsel %vm148, %v137, 0.0
  %162 = vadd.xlane.f32.xlu0 %v161
  %v163 = vpop.xlane.xlu0 %162
  %v164 = vsel %vm148, %v140, 0.0
  %165 = vadd.xlane.f32.xlu0 %v164
  %v166 = vpop.xlane.xlu0 %165
  %v167 = vsel %vm148, %v143, 0.0
  %168 = vadd.xlane.f32.xlu0 %v167
  %v169 = vpop.xlane.xlu0 %168
  %v170 = vsel %vm148, %v146, 0.0
  %171 = vadd.xlane.f32.xlu0 %v170
  %v172 = vpop.xlane.xlu0 %171
  %v173 = vmul.f32 %v151, 0.125
  %v174 = vmul.f32 %v154, 0.125
  %v175 = vmul.f32 %v157, 0.125
  %v176 = vmul.f32 %v160, 0.125
  %v177 = vmul.f32 %v163, 0.125
  %v178 = vmul.f32 %v166, 0.125
  %v179 = vmul.f32 %v169, 0.125
  %v180 = vmul.f32 %v172, 0.125
  %v181 = vmul.f32 %v125, %v125
  %v182 = vmul.f32 %v128, %v128
  %v183 = vmul.f32 %v131, %v131
  %v184 = vmul.f32 %v134, %v134
  %v185 = vmul.f32 %v137, %v137
  %v186 = vmul.f32 %v140, %v140
  %v187 = vmul.f32 %v143, %v143
  %v188 = vmul.f32 %v146, %v146
  %v189 = vsel %vm148, %v181, 0.0
  %190 = vadd.xlane.f32.xlu0 %v189
  %v191 = vpop.xlane.xlu0 %190
  %v192 = vsel %vm148, %v182, 0.0
  %193 = vadd.xlane.f32.xlu0 %v192
  %v194 = vpop.xlane.xlu0 %193
  %v195 = vsel %vm148, %v183, 0.0
  %196 = vadd.xlane.f32.xlu0 %v195
  %v197 = vpop.xlane.xlu0 %196
  %v198 = vsel %vm148, %v184, 0.0
  %199 = vadd.xlane.f32.xlu0 %v198
  %v200 = vpop.xlane.xlu0 %199
  %v201 = vsel %vm148, %v185, 0.0
  %202 = vadd.xlane.f32.xlu0 %v201
  %v203 = vpop.xlane.xlu0 %202
  %v204 = vsel %vm148, %v186, 0.0
  %205 = vadd.xlane.f32.xlu0 %v204
  %v206 = vpop.xlane.xlu0 %205
  %v207 = vsel %vm148, %v187, 0.0
  %208 = vadd.xlane.f32.xlu0 %v207
  %v209 = vpop.xlane.xlu0 %208
  %v210 = vsel %vm148, %v188, 0.0
  %211 = vadd.xlane.f32.xlu0 %v210
  %v212 = vpop.xlane.xlu0 %211
  %v213 = vmul.f32 %v191, 0.125
  %v214 = vmul.f32 %v194, 0.125
  %v215 = vmul.f32 %v197, 0.125
  %v216 = vmul.f32 %v200, 0.125
  %v217 = vmul.f32 %v203, 0.125
  %v218 = vmul.f32 %v206, 0.125
  %v219 = vmul.f32 %v209, 0.125
  %v220 = vmul.f32 %v212, 0.125
  %v221 = vmul.f32 %v173, %v173
  %v222 = vmul.f32 %v174, %v174
  %v223 = vmul.f32 %v175, %v175
  %v224 = vmul.f32 %v176, %v176
  %v225 = vmul.f32 %v177, %v177
  %v226 = vmul.f32 %v178, %v178
  %v227 = vmul.f32 %v179, %v179
  %v228 = vmul.f32 %v180, %v180
  %v229 = vsub.f32 %v213, %v221
  %v230 = vsub.f32 %v214, %v222
  %v231 = vsub.f32 %v215, %v223
  %v232 = vsub.f32 %v216, %v224
  %v233 = vsub.f32 %v217, %v225
  %v234 = vsub.f32 %v218, %v226
  %v235 = vsub.f32 %v219, %v227
  %v236 = vsub.f32 %v220, %v228
  %v237 = vmax.f32 %v229, 0.0
  %v238 = vmax.f32 %v230, 0.0
  %v239 = vmax.f32 %v231, 0.0
  %v240 = vmax.f32 %v232, 0.0
  %v241 = vmax.f32 %v233, 0.0
  %v242 = vmax.f32 %v234, 0.0
  %v243 = vmax.f32 %v235, 0.0
  %v244 = vmax.f32 %v236, 0.0
  %v245 = vadd.f32 %v237, 1e-05
  %v246 = vadd.f32 %v238, 1e-05
  %v247 = vadd.f32 %v239, 1e-05
  %v248 = vadd.f32 %v240, 1e-05
  %v249 = vadd.f32 %v241, 1e-05
  %v250 = vadd.f32 %v242, 1e-05
  %v251 = vadd.f32 %v243, 1e-05
  %v252 = vadd.f32 %v244, 1e-05
  %v253 = vrsqrt.pop %v245
  %v254 = vmul.f32 %v253, %v245
  %v255 = vmul.f32 %v254, %v253
  %v256 = vmul.f32 0.5, %v255
  %v257 = vsub.f32 1.5, %v256
  %v258 = vmul.f32 %v253, %v257
  %vm259 = vweird.f32 %v245
  %vm260 = vweird.f32 %v253
  %vm261 = vmor %vm259, %vm260
  %v262 = vsel %vm261, %v253, %v258
  %v263 = vrsqrt.pop %v246
  %v264 = vmul.f32 %v263, %v246
  %v265 = vmul.f32 %v264, %v263
  %v266 = vmul.f32 0.5, %v265
  %v267 = vsub.f32 1.5, %v266
  %v268 = vmul.f32 %v263, %v267
  %vm269 = vweird.f32 %v246
  %vm270 = vweird.f32 %v263
  %vm271 = vmor %vm269, %vm270
  %v272 = vsel %vm271, %v263, %v268
  %v273 = vrsqrt.pop %v247
  %v274 = vmul.f32 %v273, %v247
  %v275 = vmul.f32 %v274, %v273
  %v276 = vmul.f32 0.5, %v275
  %v277 = vsub.f32 1.5, %v276
  %v278 = vmul.f32 %v273, %v277
  %vm279 = vweird.f32 %v247
  %vm280 = vweird.f32 %v273
  %vm281 = vmor %vm279, %vm280
  %v282 = vsel %vm281, %v273, %v278
  %v283 = vrsqrt.pop %v248
  %v284 = vmul.f32 %v283, %v248
  %v285 = vmul.f32 %v284, %v283
  %v286 = vmul.f32 0.5, %v285
  %v287 = vsub.f32 1.5, %v286
  %v288 = vmul.f32 %v283, %v287
  %vm289 = vweird.f32 %v248
  %vm290 = vweird.f32 %v283
  %vm291 = vmor %vm289, %vm290
  %v292 = vsel %vm291, %v283, %v288
  %v293 = vrsqrt.pop %v249
  %v294 = vmul.f32 %v293, %v249
  %v295 = vmul.f32 %v294, %v293
  %v296 = vmul.f32 0.5, %v295
  %v297 = vsub.f32 1.5, %v296
  %v298 = vmul.f32 %v293, %v297
  %vm299 = vweird.f32 %v249
  %vm300 = vweird.f32 %v293
  %vm301 = vmor %vm299, %vm300
  %v302 = vsel %vm301, %v293, %v298
  %v303 = vrsqrt.pop %v250
  %v304 = vmul.f32 %v303, %v250
  %v305 = vmul.f32 %v304, %v303
  %v306 = vmul.f32 0.5, %v305
  %v307 = vsub.f32 1.5, %v306
  %v308 = vmul.f32 %v303, %v307
  %vm309 = vweird.f32 %v250
  %vm310 = vweird.f32 %v303
  %vm311 = vmor %vm309, %vm310
  %v312 = vsel %vm311, %v303, %v308
  %v313 = vrsqrt.pop %v251
  %v314 = vmul.f32 %v313, %v251
  %v315 = vmul.f32 %v314, %v313
  %v316 = vmul.f32 0.5, %v315
  %v317 = vsub.f32 1.5, %v316
  %v318 = vmul.f32 %v313, %v317
  %vm319 = vweird.f32 %v251
  %vm320 = vweird.f32 %v313
  %vm321 = vmor %vm319, %vm320
  %v322 = vsel %vm321, %v313, %v318
  %v323 = vrsqrt.pop %v252
  %v324 = vmul.f32 %v323, %v252
  %v325 = vmul.f32 %v324, %v323
  %v326 = vmul.f32 0.5, %v325
  %v327 = vsub.f32 1.5, %v326
  %v328 = vmul.f32 %v323, %v327
  %vm329 = vweird.f32 %v252
  %vm330 = vweird.f32 %v323
  %vm331 = vmor %vm329, %vm330
  %v332 = vsel %vm331, %v323, %v328
  %v333 = vmul.f32 %v22, %v262
  %v334 = vmul.f32 %v23, %v272
  %v335 = vmul.f32 %v24, %v282
  %v336 = vmul.f32 %v25, %v292
  %v337 = vmul.f32 %v26, %v302
  %v338 = vmul.f32 %v27, %v312
  %v339 = vmul.f32 %v28, %v322
  %v340 = vmul.f32 %v29, %v332
  %342 = vset.pattern.permute.xlu0 1
  %343 = vperm.xlu0 %342, %v333
  %v344 = vpop.permute.xlu0 %343
  %347 = vset.pattern.permute.xlu0 1
  %348 = vperm.xlu0 %347, %v334
  %v349 = vpop.permute.xlu0 %348
  %352 = vset.pattern.permute.xlu0 1
  %353 = vperm.xlu0 %352, %v335
  %v354 = vpop.permute.xlu0 %353
  %357 = vset.pattern.permute.xlu0 1
  %358 = vperm.xlu0 %357, %v336
  %v359 = vpop.permute.xlu0 %358
  %362 = vset.pattern.permute.xlu0 1
  %363 = vperm.xlu0 %362, %v337
  %v364 = vpop.permute.xlu0 %363
  %367 = vset.pattern.permute.xlu0 1
  %368 = vperm.xlu0 %367, %v338
  %v369 = vpop.permute.xlu0 %368
  %372 = vset.pattern.permute.xlu0 1
  %373 = vperm.xlu0 %372, %v339
  %v374 = vpop.permute.xlu0 %373
  %377 = vset.pattern.permute.xlu0 1
  %378 = vperm.xlu0 %377, %v340
  %v379 = vpop.permute.xlu0 %378
  %v381 = vmul.f32 %v125, %v344
  %v382 = vmul.f32 %v128, %v349
  %v383 = vmul.f32 %v131, %v354
  %v384 = vmul.f32 %v134, %v359
  %v385 = vmul.f32 %v137, %v364
  %v386 = vmul.f32 %v140, %v369
  %v387 = vmul.f32 %v143, %v374
  %v388 = vmul.f32 %v146, %v379
  %v389 = vmul.f32 %v173, %v333
  %v390 = vmul.f32 %v174, %v334
  %v391 = vmul.f32 %v175, %v335
  %v392 = vmul.f32 %v176, %v336
  %v393 = vmul.f32 %v177, %v337
  %v394 = vmul.f32 %v178, %v338
  %v395 = vmul.f32 %v179, %v339
  %v396 = vmul.f32 %v180, %v340
  %405 = vrot.lane.b32.xlu0 %v389, 1
  %v406 = vpop.permute.xlu0 %405
  %407 = vrot.lane.b32.xlu0 %v390, 1
  %v408 = vpop.permute.xlu0 %407
  %409 = vrot.lane.b32.xlu0 %v391, 1
  %v410 = vpop.permute.xlu0 %409
  %411 = vrot.lane.b32.xlu0 %v392, 1
  %v412 = vpop.permute.xlu0 %411
  %413 = vrot.lane.b32.xlu0 %v393, 1
  %v414 = vpop.permute.xlu0 %413
  %415 = vrot.lane.b32.xlu0 %v394, 1
  %v416 = vpop.permute.xlu0 %415
  %417 = vrot.lane.b32.xlu0 %v395, 1
  %v418 = vpop.permute.xlu0 %417
  %419 = vrot.lane.b32.xlu0 %v396, 1
  %v420 = vpop.permute.xlu0 %419
  %v429 = vsub.f32 %v22, %v406
  %v430 = vsub.f32 %v23, %v408
  %v431 = vsub.f32 %v24, %v410
  %v432 = vsub.f32 %v25, %v412
  %v433 = vsub.f32 %v26, %v414
  %v434 = vsub.f32 %v27, %v416
  %v435 = vsub.f32 %v28, %v418
  %v436 = vsub.f32 %v29, %v420
  %438 = vset.pattern.permute.xlu0 2
  %439 = vperm.xlu0 %438, %v429
  %v440 = vpop.permute.xlu0 %439
  %443 = vset.pattern.permute.xlu0 2
  %444 = vperm.xlu0 %443, %v430
  %v445 = vpop.permute.xlu0 %444
  %448 = vset.pattern.permute.xlu0 2
  %449 = vperm.xlu0 %448, %v431
  %v450 = vpop.permute.xlu0 %449
  %453 = vset.pattern.permute.xlu0 2
  %454 = vperm.xlu0 %453, %v432
  %v455 = vpop.permute.xlu0 %454
  %458 = vset.pattern.permute.xlu0 2
  %459 = vperm.xlu0 %458, %v433
  %v460 = vpop.permute.xlu0 %459
  %463 = vset.pattern.permute.xlu0 2
  %464 = vperm.xlu0 %463, %v434
  %v465 = vpop.permute.xlu0 %464
  %468 = vset.pattern.permute.xlu0 2
  %469 = vperm.xlu0 %468, %v435
  %v470 = vpop.permute.xlu0 %469
  %473 = vset.pattern.permute.xlu0 2
  %474 = vperm.xlu0 %473, %v436
  %v475 = vpop.permute.xlu0 %474
  %v477 = vadd.f32 %v381, %v440
  %v478 = vadd.f32 %v382, %v445
  %v479 = vadd.f32 %v383, %v450
  %v480 = vadd.f32 %v384, %v455
  %v481 = vadd.f32 %v385, %v460
  %v482 = vadd.f32 %v386, %v465
  %v483 = vadd.f32 %v387, %v470
  %v484 = vadd.f32 %v388, %v475
  %v485 = vmax.f32 %v477, 0.0
  %v486 = vmax.f32 %v478, 0.0
  %v487 = vmax.f32 %v479, 0.0
  %v488 = vmax.f32 %v480, 0.0
  %v489 = vmax.f32 %v481, 0.0
  %v490 = vmax.f32 %v482, 0.0
  %v491 = vmax.f32 %v483, 0.0
  %v492 = vmax.f32 %v484, 0.0
  %v493 = vld [vmem:[%s2] sm:$0xff]
  %v494 = vld [vmem:[%s2 + $0x8] sm:$0xff]
  %v495 = vld [vmem:[%s2 + $0x10] sm:$0xff]
  %v496 = vld [vmem:[%s2 + $0x18] sm:$0xff]
  %497 = vset.pattern.permute.xlu0 3
  %498 = vperm.xlu0 %497, %v22
  %v499 = vpop.permute.xlu0 %498
  %501 = vset.pattern.permute.xlu0 3
  %502 = vperm.xlu0 %501, %v23
  %v503 = vpop.permute.xlu0 %502
  %505 = vset.pattern.permute.xlu0 3
  %506 = vperm.xlu0 %505, %v24
  %v507 = vpop.permute.xlu0 %506
  %509 = vset.pattern.permute.xlu0 3
  %510 = vperm.xlu0 %509, %v25
  %v511 = vpop.permute.xlu0 %510
  %vm513 = vcmask 523264
  %v515 = vsel %vm513, %v493, 0
  %v518 = vsel %vm513, %v494, 0
  %v521 = vsel %vm513, %v495, 0
  %v524 = vsel %vm513, %v496, 0
  %526 = vmatpush.msra.mxu0 0.0
  %527 = vmatpush.msra.mxu0 0.0
  %528 = vmatpush.msra.mxu0 0.0
  %529 = vmatpush.msra.mxu0 0.0
  %530 = vmatpush.msra.mxu0 0.0
  %531 = vmatpush.msra.mxu0 0.0
  %532 = vmatpush.msra.mxu0 0.0
  %533 = vmatpush.msra.mxu0 0.0
  %534 = vmatpush.msra.mxu0 %v492
  %535 = vmatpush.msra.mxu0 %v491
  %536 = vmatpush.msra.mxu0 %v490
  %537 = vmatpush.msra.mxu0 %v489
  %538 = vmatpush.msra.mxu0 %v488
  %539 = vmatpush.msra.mxu0 %v487
  %540 = vmatpush.msra.mxu0 %v486
  %541 = vmatpush.msra.mxu0 %v485
  %542 = vmatmul.f32.gmra.mxu0 %v515
  %v543 = vpop.f32.mrf.mxu0
  %v544 = vadd.f32 %v499, %v543
  %545 = vmatmul.f32.gmra.mxu0 %v518
  %v546 = vpop.f32.mrf.mxu0
  %v547 = vadd.f32 %v503, %v546
  %548 = vmatmul.f32.gmra.mxu0 %v521
  %v549 = vpop.f32.mrf.mxu0
  %v550 = vadd.f32 %v507, %v549
  %551 = vmatmul.f32.gmra.mxu0 %v524
  %v552 = vpop.f32.mrf.mxu0
  %v553 = vadd.f32 %v511, %v552
  %554 = vdwg.mxu0
  %v555 = vsel %vm148, %v544, 0.0
  %556 = vadd.xlane.f32.xlu0 %v555
  %v557 = vpop.xlane.xlu0 %556
  %v558 = vsel %vm148, %v547, 0.0
  %559 = vadd.xlane.f32.xlu0 %v558
  %v560 = vpop.xlane.xlu0 %559
  %v561 = vsel %vm148, %v550, 0.0
  %562 = vadd.xlane.f32.xlu0 %v561
  %v563 = vpop.xlane.xlu0 %562
  %v564 = vsel %vm148, %v553, 0.0
  %565 = vadd.xlane.f32.xlu0 %v564
  %v566 = vpop.xlane.xlu0 %565
  %v567 = vmul.f32 %v557, 0.125
  %v568 = vmul.f32 %v560, 0.125
  %v569 = vmul.f32 %v563, 0.125
  %v570 = vmul.f32 %v566, 0.125
  %v571 = vmul.f32 %v544, %v544
  %v572 = vmul.f32 %v547, %v547
  %v573 = vmul.f32 %v550, %v550
  %v574 = vmul.f32 %v553, %v553
  %v575 = vsel %vm148, %v571, 0.0
  %576 = vadd.xlane.f32.xlu0 %v575
  %v577 = vpop.xlane.xlu0 %576
  %v578 = vsel %vm148, %v572, 0.0
  %579 = vadd.xlane.f32.xlu0 %v578
  %v580 = vpop.xlane.xlu0 %579
  %v581 = vsel %vm148, %v573, 0.0
  %582 = vadd.xlane.f32.xlu0 %v581
  %v583 = vpop.xlane.xlu0 %582
  %v584 = vsel %vm148, %v574, 0.0
  %585 = vadd.xlane.f32.xlu0 %v584
  %v586 = vpop.xlane.xlu0 %585
  %v587 = vmul.f32 %v577, 0.125
  %v588 = vmul.f32 %v580, 0.125
  %v589 = vmul.f32 %v583, 0.125
  %v590 = vmul.f32 %v586, 0.125
  %v591 = vmul.f32 %v567, %v567
  %v592 = vmul.f32 %v568, %v568
  %v593 = vmul.f32 %v569, %v569
  %v594 = vmul.f32 %v570, %v570
  %v595 = vsub.f32 %v587, %v591
  %v596 = vsub.f32 %v588, %v592
  %v597 = vsub.f32 %v589, %v593
  %v598 = vsub.f32 %v590, %v594
  %v599 = vmax.f32 %v595, 0.0
  %v600 = vmax.f32 %v596, 0.0
  %v601 = vmax.f32 %v597, 0.0
  %v602 = vmax.f32 %v598, 0.0
  %v603 = vadd.f32 %v599, 1e-05
  %v604 = vadd.f32 %v600, 1e-05
  %v605 = vadd.f32 %v601, 1e-05
  %v606 = vadd.f32 %v602, 1e-05
  %v607 = vrsqrt.pop %v603
  %v608 = vmul.f32 %v607, %v603
  %v609 = vmul.f32 %v608, %v607
  %v610 = vmul.f32 0.5, %v609
  %v611 = vsub.f32 1.5, %v610
  %v612 = vmul.f32 %v607, %v611
  %vm613 = vweird.f32 %v603
  %vm614 = vweird.f32 %v607
  %vm615 = vmor %vm613, %vm614
  %v616 = vsel %vm615, %v607, %v612
  %v617 = vrsqrt.pop %v604
  %v618 = vmul.f32 %v617, %v604
  %v619 = vmul.f32 %v618, %v617
  %v620 = vmul.f32 0.5, %v619
  %v621 = vsub.f32 1.5, %v620
  %v622 = vmul.f32 %v617, %v621
  %vm623 = vweird.f32 %v604
  %vm624 = vweird.f32 %v617
  %vm625 = vmor %vm623, %vm624
  %v626 = vsel %vm625, %v617, %v622
  %v627 = vrsqrt.pop %v605
  %v628 = vmul.f32 %v627, %v605
  %v629 = vmul.f32 %v628, %v627
  %v630 = vmul.f32 0.5, %v629
  %v631 = vsub.f32 1.5, %v630
  %v632 = vmul.f32 %v627, %v631
  %vm633 = vweird.f32 %v605
  %vm634 = vweird.f32 %v627
  %vm635 = vmor %vm633, %vm634
  %v636 = vsel %vm635, %v627, %v632
  %v637 = vrsqrt.pop %v606
  %v638 = vmul.f32 %v637, %v606
  %v639 = vmul.f32 %v638, %v637
  %v640 = vmul.f32 0.5, %v639
  %v641 = vsub.f32 1.5, %v640
  %v642 = vmul.f32 %v637, %v641
  %vm643 = vweird.f32 %v606
  %vm644 = vweird.f32 %v637
  %vm645 = vmor %vm643, %vm644
  %v646 = vsel %vm645, %v637, %v642
  %v647 = vmul.f32 %v22, %v616
  %v648 = vmul.f32 %v23, %v626
  %v649 = vmul.f32 %v24, %v636
  %v650 = vmul.f32 %v25, %v646
  %652 = vset.pattern.permute.xlu0 4
  %653 = vperm.xlu0 %652, %v647
  %v654 = vpop.permute.xlu0 %653
  %657 = vset.pattern.permute.xlu0 4
  %658 = vperm.xlu0 %657, %v648
  %v659 = vpop.permute.xlu0 %658
  %662 = vset.pattern.permute.xlu0 4
  %663 = vperm.xlu0 %662, %v649
  %v664 = vpop.permute.xlu0 %663
  %667 = vset.pattern.permute.xlu0 4
  %668 = vperm.xlu0 %667, %v650
  %v669 = vpop.permute.xlu0 %668
  %v671 = vmul.f32 %v544, %v654
  %v672 = vmul.f32 %v547, %v659
  %v673 = vmul.f32 %v550, %v664
  %v674 = vmul.f32 %v553, %v669
  %v675 = vmul.f32 %v567, %v647
  %v676 = vmul.f32 %v568, %v648
  %v677 = vmul.f32 %v569, %v649
  %v678 = vmul.f32 %v570, %v650
  %683 = vrot.lane.b32.xlu0 %v675, 1
  %v684 = vpop.permute.xlu0 %683
  %685 = vrot.lane.b32.xlu0 %v676, 1
  %v686 = vpop.permute.xlu0 %685
  %687 = vrot.lane.b32.xlu0 %v677, 1
  %v688 = vpop.permute.xlu0 %687
  %689 = vrot.lane.b32.xlu0 %v678, 1
  %v690 = vpop.permute.xlu0 %689
  %v695 = vsub.f32 %v22, %v684
  %v696 = vsub.f32 %v23, %v686
  %v697 = vsub.f32 %v24, %v688
  %v698 = vsub.f32 %v25, %v690
  %700 = vset.pattern.permute.xlu0 5
  %701 = vperm.xlu0 %700, %v695
  %v702 = vpop.permute.xlu0 %701
  %705 = vset.pattern.permute.xlu0 5
  %706 = vperm.xlu0 %705, %v696
  %v707 = vpop.permute.xlu0 %706
  %710 = vset.pattern.permute.xlu0 5
  %711 = vperm.xlu0 %710, %v697
  %v712 = vpop.permute.xlu0 %711
  %715 = vset.pattern.permute.xlu0 5
  %716 = vperm.xlu0 %715, %v698
  %v717 = vpop.permute.xlu0 %716
  %v719 = vadd.f32 %v671, %v702
  %v720 = vadd.f32 %v672, %v707
  %v721 = vadd.f32 %v673, %v712
  %v722 = vadd.f32 %v674, %v717
  %v723 = vmax.f32 %v719, 0.0
  %v724 = vmax.f32 %v720, 0.0
  %v725 = vmax.f32 %v721, 0.0
  %v726 = vmax.f32 %v722, 0.0
  %v727 = vld [vmem:[%s3] sm:$0xff]
  %v728 = vld [vmem:[%s3 + $0x8] sm:$0x3]
  %729 = vset.pattern.permute.xlu0 6
  %730 = vperm.xlu0 %729, %v22
  %v731 = vpop.permute.xlu0 %730
  %733 = vset.pattern.permute.xlu0 6
  %734 = vperm.xlu0 %733, %v23
  %v735 = vpop.permute.xlu0 %734
  %vm737 = vcmask 261120
  %v739 = vsel %vm737, %v727, 0
  %v742 = vsel %vm737, %v728, 0
  %744 = vmatpush.msra.mxu0 0.0
  %745 = vmatpush.msra.mxu0 0.0
  %746 = vmatpush.msra.mxu0 0.0
  %747 = vmatpush.msra.mxu0 0.0
  %748 = vmatpush.msra.mxu0 0.0
  %749 = vmatpush.msra.mxu0 0.0
  %750 = vmatpush.msra.mxu0 0.0
  %751 = vmatpush.msra.mxu0 0.0
  %752 = vmatpush.msra.mxu0 0.0
  %753 = vmatpush.msra.mxu0 0.0
  %754 = vmatpush.msra.mxu0 0.0
  %755 = vmatpush.msra.mxu0 0.0
  %756 = vmatpush.msra.mxu0 %v726
  %757 = vmatpush.msra.mxu0 %v725
  %758 = vmatpush.msra.mxu0 %v724
  %759 = vmatpush.msra.mxu0 %v723
  %760 = vmatmul.f32.gmra.mxu0 %v739
  %v761 = vpop.f32.mrf.mxu0
  %v762 = vadd.f32 %v731, %v761
  %763 = vmatmul.f32.gmra.mxu0 %v742
  %v764 = vpop.f32.mrf.mxu0
  %v765 = vadd.f32 %v735, %v764
  %766 = vdwg.mxu0
  %v767 = vsub.f32 0.0, %v762
  %v768 = vsub.f32 0.0, %v765
  %v769 = vmul.f32 %v767, 1.442695
  %v770 = vpow.pop %v769
  %v771 = vmul.f32 %v768, 1.442695
  %v772 = vpow.pop %v771
  %v773 = vadd.f32 %v770, 1.0
  %v774 = vadd.f32 %v772, 1.0
  %v775 = vrcp.pop %v773
  %v776 = vmul.f32 %v773, %v775
  %v777 = vsub.f32 1.0, %v776
  %v778 = vmul.f32 %v775, %v777
  %v779 = vadd.f32 %v775, %v778
  %vm780 = vweird.f32 %v773
  %vm781 = vweird.f32 %v775
  %vm782 = vmor %vm780, %vm781
  %v783 = vsel %vm782, %v775, %v779
  %v784 = vand.u32 2147483647, %v773
  %vm785 = vcmp.eq.f32.partialorder %v784, 8.507059e+37
  %v786 = vand.u32 %v773, 2147483648
  %v787 = vor.u32 1.1754944e-38, %v786
  %v788 = vsel %vm785, %v787, %v783
  %v789 = vmul.f32 1.0, %v788
  %v790 = vrcp.pop %v774
  %v791 = vmul.f32 %v774, %v790
  %v792 = vsub.f32 1.0, %v791
  %v793 = vmul.f32 %v790, %v792
  %v794 = vadd.f32 %v790, %v793
  %vm795 = vweird.f32 %v774
  %vm796 = vweird.f32 %v790
  %vm797 = vmor %vm795, %vm796
  %v798 = vsel %vm797, %v790, %v794
  %v799 = vand.u32 2147483647, %v774
  %vm800 = vcmp.eq.f32.partialorder %v799, 8.507059e+37
  %v801 = vand.u32 %v774, 2147483648
  %v802 = vor.u32 1.1754944e-38, %v801
  %v803 = vsel %vm800, %v802, %v798
  %v804 = vmul.f32 1.0, %v803
  %805 = vst.msk [vmem:[%s5] sm:$0xff] %vm148, %v789
  %vm806 = vcmask 58368
  %807 = vst.msk [vmem:[%s5 + $0x8] sm:$0x3] %vm806, %v804
  // Predicated region
  $region22: #{scoring_forward.1} parent=0 // pred_check
    _
  $region23: #{scoring_forward.1} parent=0 // pred_check_branch
    %809 = sbr.rel (0) target = $region25
  $region24: #{scoring_forward.1} parent=0 // pred_region
    _
  $region25: #{scoring_forward.1} parent=0 // pred_fallthru
    _
  // Predicated region
  $region26: #{scoring_forward.1} parent=0 // pred_check
    _
  $region27: #{scoring_forward.1} parent=0 // pred_check_branch
    %811 = sbr.rel (0) target = $region29
  $region28: #{scoring_forward.1} parent=0 // pred_region
    _
  $region29: #{scoring_forward.1} parent=0 // pred_fallthru
    _

</llo_original>
